<compile_context>
chip_gen: v5e
topology: v5e:2x2
jax: 0.10.0
libtpu: 0.0.40
codegen_flags: <defaults>
</compile_context>

<pallas_src>
import functools

import jax
import jax.numpy as jnp
from jax.experimental import pallas as pl
from jax.experimental.pallas import tpu as pltpu


def _round_up(x, m):
    return (x + m - 1) // m * m


def _patch_embed_kernel(x_ref, w_ref, b_ref, o_ref):
    # x_ref: (TM, K) bf16, w_ref: (K, Npad) bf16, b_ref: (1, Npad) f32,
    # o_ref: (TM, Npad) f32.  bf16 x bf16 -> f32 accumulate on the MXU,
    # bias add in f32 on the VPU.
    acc = jnp.dot(x_ref[...], w_ref[...], preferred_element_type=jnp.float32)
    o_ref[...] = (acc + b_ref[...]).astype(o_ref.dtype)


def patch_embedding(x, weight, bias, patch_size, *, tile_m=512):
    """x: (B, C, H, W) f32; weight: (d_model, C, P, P); bias: (d_model,)."""
    B, C, H, W = x.shape
    P = patch_size
    d_model = weight.shape[0]
    nh, nw = H // P, W // P
    num_patches = nh * nw
    K = C * P * P
    M = B * num_patches
    N = d_model

    # ---- patch extraction (one fused XLA transpose + bf16-cast pass) -------
    # TODO(synk): fusing this NCHW->patch-vector transpose into the kernel
    # (per-tile XLU transpose on VMEM data) would remove one HBM round-trip of
    # x; kept in the wrapper because Mosaic in-kernel rank-5 transposes are not
    # reliably supported.
    xp = x.reshape(B, C, nh, P, nw, P)
    xp = jnp.transpose(xp, (0, 2, 4, 1, 3, 5)).reshape(M, K)
    xp = xp.astype(jnp.bfloat16)

    # ---- weight / bias: (d_model, C, P, P) -> (K, N), lane-dense N ---------
    w_mat = weight.reshape(N, K).T.astype(jnp.bfloat16)          # (K, N)
    n_pad = _round_up(N, 128)
    if n_pad != N:
        w_mat = jnp.pad(w_mat, ((0, 0), (0, n_pad - N)))
        b_vec = jnp.pad(bias, (0, n_pad - N))
    else:
        b_vec = bias
    b_mat = b_vec.reshape(1, n_pad).astype(jnp.float32)

    # ---- tile M (pad so the grid divides evenly, sublane aligned) ----------
    tm = min(tile_m, _round_up(M, 8))
    m_pad = _round_up(M, tm)
    if m_pad != M:
        xp = jnp.pad(xp, ((0, m_pad - M), (0, 0)))
    grid_m = m_pad // tm

    cost = pl.CostEstimate(
        flops=2 * m_pad * K * n_pad,
        transcendentals=0,
        bytes_accessed=(m_pad * K * 2 + K * n_pad * 2
                        + m_pad * n_pad * 4 + n_pad * 4),
    )

    out = pl.pallas_call(
        _patch_embed_kernel,
        out_shape=jax.ShapeDtypeStruct((m_pad, n_pad), jnp.float32),
        grid=(grid_m,),
        in_specs=[
            pl.BlockSpec((tm, K), lambda i: (i, 0)),          # streams over M
            pl.BlockSpec((K, n_pad), lambda i: (0, 0)),       # resident weight
            pl.BlockSpec((1, n_pad), lambda i: (0, 0)),       # resident bias
        ],
        out_specs=pl.BlockSpec((tm, n_pad), lambda i: (i, 0)),
        compiler_params=pltpu.CompilerParams(
            dimension_semantics=("parallel",)),
        cost_estimate=cost,
    )(xp, w_mat, b_mat)

    out = out[:M, :N]
    return out.reshape(B, num_patches, d_model)


if __name__ == "__main__":
    # Small shapes consistent with the module's forward.
    B, C, H, W = 2, 4, 16, 16
    P = 4
    d_model = 32

    key = jax.random.PRNGKey(0)
    kx, kw, kb = jax.random.split(key, 3)

    x = jax.random.normal(kx, (B, C, H, W), dtype=jnp.float32)
    # Deterministic parameter init (conv weight/bias shapes from __init__).
    weight = jax.random.normal(kw, (d_model, C, P, P), dtype=jnp.float32) * 0.02
    bias = jax.random.normal(kb, (d_model,), dtype=jnp.float32) * 0.02

    fn = jax.jit(functools.partial(patch_embedding, patch_size=P))
    out = jax.block_until_ready(fn(x, weight, bias))

    # Reference: plain JAX conv path in f32.  The kernel uses bf16 operands
    # with f32 accumulation, so the tolerance is relaxed accordingly.
    ref = jax.lax.conv_general_dilated(
        x, weight, window_strides=(P, P), padding="VALID",
        dimension_numbers=("NCHW", "OIHW", "NCHW"))
    ref = ref + bias.reshape(1, d_model, 1, 1)
    ref = ref.reshape(B, d_model, -1).transpose(0, 2, 1)

    assert out.shape == (B, (H // P) * (W // P), d_model)
    assert jnp.allclose(out, ref, atol=1e-2, rtol=1e-2)
    print("KERNEL_OK")
</pallas_src>

<mosaic_0001>
module attributes {stable_mosaic.version = 11 : i64} {
  func.func @_patch_embed_kernel(%arg0: i32, %arg1: memref<32x64xbf16, #tpu.memory_space<vmem>>, %arg2: memref<64x128xbf16, #tpu.memory_space<vmem>>, %arg3: memref<1x128xf32, #tpu.memory_space<vmem>>, %arg4: memref<32x128xf32, #tpu.memory_space<vmem>>) attributes {dimension_semantics = [#tpu.dimension_semantics<parallel>], iteration_bounds = array<i64: 1>, scalar_prefetch = 0 : i64, scratch_operands = 0 : i64, tpu.core_type = #tpu.core_type<tc>, window_params = [{transform_indices = @transform_0, window_bounds = array<i64: 32, 64>}, {pipeline_mode = #tpu.pipeline_mode<synchronous>, transform_indices = @transform_1, window_bounds = array<i64: 64, 128>}, {pipeline_mode = #tpu.pipeline_mode<synchronous>, transform_indices = @transform_2, window_bounds = array<i64: 1, 128>}, {transform_indices = @transform_3, window_bounds = array<i64: 32, 128>}]} {
    %c0 = arith.constant 0 : index
    %c0_0 = arith.constant 0 : index
    %0 = vector.load %arg1[%c0, %c0_0] : memref<32x64xbf16, #tpu.memory_space<vmem>>, vector<32x64xbf16>
    %c0_1 = arith.constant 0 : index
    %c0_2 = arith.constant 0 : index
    %1 = vector.load %arg2[%c0_1, %c0_2] : memref<64x128xbf16, #tpu.memory_space<vmem>>, vector<64x128xbf16>
    %cst = arith.constant dense<0.000000e+00> : vector<32x128xf32>
    %2 = tpu.matmul %0, %1, %cst {dimension_numbers = #tpu.dot_dimension_numbers<[1], [0], [0], [1], [0, 0, 1, 1], [], []>} : vector<32x64xbf16>, vector<64x128xbf16>, vector<32x128xf32> -> vector<32x128xf32>
    %c0_3 = arith.constant 0 : index
    %c0_4 = arith.constant 0 : index
    %3 = vector.load %arg3[%c0_3, %c0_4] : memref<1x128xf32, #tpu.memory_space<vmem>>, vector<1x128xf32>
    %4 = vector.broadcast %3 : vector<1x128xf32> to vector<32x128xf32>
    %5 = arith.addf %2, %4 : vector<32x128xf32>
    %c0_5 = arith.constant 0 : index
    %c0_6 = arith.constant 0 : index
    %6 = vector.load %arg4[%c0_5, %c0_6] : memref<32x128xf32, #tpu.memory_space<vmem>>, vector<32x128xf32>
    tpu.vector_store %arg4[%c0_5, %c0_6], %5 {strides = array<i32>} : memref<32x128xf32, #tpu.memory_space<vmem>>, vector<32x128xf32>,
    return
  }
  func.func @transform_0(%arg0: i32) -> (i32, i32) {
    %c0_i32 = arith.constant 0 : i32
    %c0_i32_0 = arith.constant 0 : i32
    return %arg0, %c0_i32 : i32, i32
  }
  func.func @transform_1(%arg0: i32) -> (i32, i32) {
    %c0_i32 = arith.constant 0 : i32
    %c0_i32_0 = arith.constant 0 : i32
    %c0_i32_1 = arith.constant 0 : i32
    return %c0_i32, %c0_i32_0 : i32, i32
  }
  func.func @transform_2(%arg0: i32) -> (i32, i32) {
    %c0_i32 = arith.constant 0 : i32
    %c0_i32_0 = arith.constant 0 : i32
    %c0_i32_1 = arith.constant 0 : i32
    return %c0_i32, %c0_i32_0 : i32, i32
  }
  func.func @transform_3(%arg0: i32) -> (i32, i32) {
    %c0_i32 = arith.constant 0 : i32
    %c0_i32_0 = arith.constant 0 : i32
    return %arg0, %c0_i32 : i32, i32
  }
}

</mosaic_0001>

<llo_original>
// kernel: patch_embedding.1
$region0: #{patch_embedding.1}
  #allocation0 [shape = 'u32[]', space=smem, size = 0x4, offset = 0x4, fixed_abs, tag = 'smem constant byte address 0x4 - core index']
  #allocation1 [shape = 'u32[72,128]{1,0:T(1,128)}', space=vmem, size = 0x9000, scoped, tag = 'internal scratch']
  %s0 = inlined_call_operand.vmem [shape: bf16[32,64], index: 0, kind: input, shape index: {}]
  %s1 = inlined_call_operand.vmem [shape: bf16[64,128], index: 1, kind: input, shape index: {}]
  %s2 = inlined_call_operand.vmem [shape: f32[1,128], index: 2, kind: input, shape index: {}]
  %s3 = inlined_call_operand.hbm [shape: f32[32,128], index: 3, kind: output, shape index: {}]
  %s4 = sld [smem:[#allocation0]]
  $region22: #{patch_embedding.1} parent=0
    _
  %s6 = ssub.s32 1, %s4
  %s7 = scalar_select 0, %s6, %s4
  $region1: #{patch_embedding.1} parent=0
    #allocation2 [shape = 'u8[16384]{0}', space=vmem, size = 0x4000, scoped, tag = 'output window, operand 0, single buffered']
    #allocation3 [shape = 's32[1]{0}', space=sflag, size = 0x4, scoped, tag = 'scoped memory for patch_embedding.1']
    %8 = vsyncpa [#allocation3], 0
    // Predicated region
    $region2: #{patch_embedding.1} parent=1 // pred_check
      _
    $region3: #{patch_embedding.1} parent=1 // pred_check_branch
      %10 = sbr.rel (0) target = $region5
    $region4: #{patch_embedding.1} parent=1 // pred_region
      _
    $region5: #{patch_embedding.1} parent=1 // pred_fallthru
      _
    // Predicated region
    $region6: #{patch_embedding.1} parent=1 // pred_check
      _
    $region7: #{patch_embedding.1} parent=1 // pred_check_branch
      %12 = sbr.rel (0) target = $region9
    $region8: #{patch_embedding.1} parent=1 // pred_region
      _
    $region9: #{patch_embedding.1} parent=1 // pred_fallthru
      _
    // Predicated region
    $region10: #{patch_embedding.1} parent=1 // pred_check
      _
    $region11: #{patch_embedding.1} parent=1 // pred_check_branch
      %14 = sbr.rel (0) target = $region13
    $region12: #{patch_embedding.1} parent=1 // pred_region
      _
    $region13: #{patch_embedding.1} parent=1 // pred_fallthru
      _
    %v16 = vld [vmem:[%s0] sm:$0xf]
    %v17 = vld [vmem:[%s0 + $0x4] sm:$0xf]
    %v18 = vld [vmem:[%s0 + $0x8] sm:$0xf]
    %v19 = vld [vmem:[%s0 + $0xc] sm:$0xf]
    %v20 = vld [vmem:[%s1] sm:$0xf]
    %v21 = vld [vmem:[%s1 + $0x4] sm:$0xf]
    %v22 = vld [vmem:[%s1 + $0x8] sm:$0xf]
    %v23 = vld [vmem:[%s1 + $0xc] sm:$0xf]
    %v24 = vld [vmem:[%s1 + $0x10] sm:$0xf]
    %v25 = vld [vmem:[%s1 + $0x14] sm:$0xf]
    %v26 = vld [vmem:[%s1 + $0x18] sm:$0xf]
    %v27 = vld [vmem:[%s1 + $0x1c] sm:$0xf]
    %v28 = vld [vmem:[%s2] sm:$0x1]
    %v30 = vperm.slane %v28, 0
    %v36 = vunpack.c.l.b16 %v16
    %v37 = vunpack.c.l.b16 %v17
    %v38 = vunpack.c.l.b16 %v18
    %v39 = vunpack.c.l.b16 %v19
    %v40 = vpack.c.b16 %v37, %v36
    %v41 = vpack.c.b16 %v39, %v38
    %v50 = vunpack.c.l.b16 %v20
    %v51 = vunpack.c.l.b16 %v21
    %v52 = vunpack.c.l.b16 %v22
    %v53 = vunpack.c.l.b16 %v23
    %v54 = vunpack.c.l.b16 %v24
    %v55 = vunpack.c.l.b16 %v25
    %v56 = vunpack.c.l.b16 %v26
    %v57 = vunpack.c.l.b16 %v27
    %v58 = vpack.c.b16 %v51, %v50
    %v59 = vpack.c.b16 %v53, %v52
    %v60 = vpack.c.b16 %v55, %v54
    %v61 = vpack.c.b16 %v57, %v56
    %vm66 = vcmask 523264
    %v68 = vsel %vm66, %v40, 0
    %v71 = vsel %vm66, %v41, 0
    %73 = vmatpush.bf16.msra.mxu0 0
    %74 = vmatpush.bf16.msra.mxu0 0
    %75 = vmatpush.bf16.msra.mxu0 0
    %76 = vmatpush.bf16.msra.mxu0 0
    %77 = vmatpush.bf16.msra.mxu0 %v61
    %78 = vmatpush.bf16.msra.mxu0 %v60
    %79 = vmatpush.bf16.msra.mxu0 %v59
    %80 = vmatpush.bf16.msra.mxu0 %v58
    %81 = vmatmul.bf16.gmra.mxu0 %v68
    %v82 = vpop.f32.mrf.mxu0
    %v83 = vadd.f32 %v30, %v82
    %v84 = vpop.f32.mrf.mxu0
    %v85 = vadd.f32 %v30, %v84
    %86 = vmatmul.bf16.gmra.mxu0 %v71
    %v87 = vpop.f32.mrf.mxu0
    %v88 = vadd.f32 %v30, %v87
    %v89 = vpop.f32.mrf.mxu0
    %v90 = vadd.f32 %v30, %v89
    %91 = vdwg.mxu0
    %92 = vst [vmem:[#allocation2] sm:$0xff] %v83
    %93 = vst [vmem:[#allocation2 + $0x8] sm:$0xff] %v85
    %94 = vst [vmem:[#allocation2 + $0x10] sm:$0xff] %v88
    %95 = vst [vmem:[#allocation2 + $0x18] sm:$0xff] %v90
    // Predicated region
    $region14: #{patch_embedding.1} parent=1 // pred_check
      _
    $region15: #{patch_embedding.1} parent=1 // pred_check_branch
      %97 = sbr.rel (0) target = $region17
    $region16: #{patch_embedding.1} parent=1 // pred_region
      %99 = vsyncadd [#allocation3], 0
      %s100 = sshll.u32 [#allocation2], 4
      %s101 = int_to_ptr.vmem [resolvable:$true] %s100
      %s102 = sshll.u32 %s3, 4
      %s103 = int_to_ptr.hbm [resolvable:$true] %s102
      %108 = dma.vmem_to_hbm [thread:$0]  %s101, 512, %s103, [#allocation3], 128, 128, 8
    $region17: #{patch_embedding.1} parent=1 // pred_fallthru
      _
    // Predicated region
    $region18: #{patch_embedding.1} parent=1 // pred_check
      _
    $region19: #{patch_embedding.1} parent=1 // pred_check_branch
      %110 = sbr.rel (0) target = $region21
    $region20: #{patch_embedding.1} parent=1 // pred_region
      %112 = dma.done [#allocation3], 512
    $region21: #{patch_embedding.1} parent=1 // pred_fallthru
      _
    %113 = vsyncpa [#allocation3], 1

</llo_original>
